<compile_context>
chip_gen: v7x
topology: tpu7x:2x2x1
jax: 0.10.0
libtpu: 0.0.40
codegen_flags: <defaults>
</compile_context>

<pallas_src>
import jax
import jax.numpy as jnp
from jax.experimental import pallas as pl
from jax.experimental.pallas import tpu as pltpu


def encoder_kernel(inv_temp_ref, w_ref, noise_ref, x_ref, out_ref):
    # inv_temp_ref : (1, 1)              f32 in SMEM   (1 / temperature)
    # w_ref        : (out_dim, in_dim)   f32 in VMEM   (weight1, full block)
    # noise_ref    : (out_dim, in_dim)   f32 in VMEM   (gumbel noise, transposed)
    # x_ref        : (in_dim, TN)        f32 in VMEM   (lane tile of folded batch)
    # out_ref      : (out_dim, TN)       f32 in VMEM
    inv_temp = inv_temp_ref[0, 0]

    # (weight1.t() + gumbel) / temp, expressed in (out_dim, in_dim) layout.
    y = (w_ref[...] + noise_ref[...]) * inv_temp

    # softmax over dim=-1 of weight1.t()  <=>  softmax over out_dim (axis 0 here)
    y = y - jnp.max(y, axis=0, keepdims=True)
    e = jnp.exp(y)
    inv_colsum = pl.reciprocal(jnp.sum(e, axis=0, keepdims=True), approx=False)
    cg = e * inv_colsum                                   # (out_dim, in_dim)

    # CG / CG.sum(1, keepdim=True): normalize each out_dim row over in_dim
    inv_rowsum = pl.reciprocal(jnp.sum(cg, axis=1, keepdims=True), approx=False)
    cg = cg * inv_rowsum

    # Lane-dense matmul on this tile: (out_dim, in_dim) @ (in_dim, TN).
    # CG is one 8x16 vreg; recomputing it per block is effectively free and keeps
    # the grid axis state-free (=> "parallel" / megacore-shardable).
    out_ref[...] = jnp.dot(
        cg, x_ref[...], preferred_element_type=jnp.float32
    ).astype(out_ref.dtype)


def _round_up(x, m):
    return ((x + m - 1) // m) * m


def encoder_forward(xyz, weight1, gumbel_noise_t, temp, *, max_tile_n=2048):
    """xyz: (B, in_dim, D); weight1: (out_dim, in_dim);
    gumbel_noise_t: (out_dim, in_dim) = sample_gumbel((in_dim, out_dim)).T;
    temp: python/scalar float (or traced scalar)."""
    B, in_dim, D = xyz.shape
    out_dim = weight1.shape[0]
    inv_temp_arr = (1.0 / jnp.asarray(temp, jnp.float32)).reshape(1, 1)

    # Fold the batch into the lane axis: (B, in_dim, D) -> (in_dim, B*D).
    bd = B * D
    x_flat = jnp.transpose(xyz, (1, 0, 2)).reshape(in_dim, bd)

    # Lane tile: multiple of 128, capped so double-buffered tiles stay tiny
    # (safe for v7x's 64 MiB VMEM as well as v5e/v6e).
    tn = min(max_tile_n, _round_up(bd, 128))
    tn = _round_up(tn, 128)
    bd_grid = _round_up(bd, tn)

    # Zero-pad ONLY the lane axis (zeros are inert through the matmul); never
    # pad in_dim, which would corrupt the CG row-sum normalization.
    if bd_grid != bd:
        x_flat = jnp.pad(x_flat, ((0, 0), (0, bd_grid - bd)))

    grid = (bd_grid // tn,)

    out_flat = pl.pallas_call(
        encoder_kernel,
        out_shape=jax.ShapeDtypeStruct((out_dim, bd_grid), jnp.float32),
        grid=grid,
        in_specs=[
            # 1/temp scalar: whole array in SMEM every iteration.
            pl.BlockSpec(memory_space=pltpu.MemorySpace.SMEM),
            # weight1 and gumbel noise: full blocks, same block every iteration
            # (resident across the grid, no re-DMA).
            pl.BlockSpec((out_dim, in_dim), lambda i: (0, 0)),
            pl.BlockSpec((out_dim, in_dim), lambda i: (0, 0)),
            # x: lane-tiled along the folded batch axis.
            pl.BlockSpec((in_dim, tn), lambda i: (0, i)),
        ],
        out_specs=pl.BlockSpec((out_dim, tn), lambda i: (0, i)),
        compiler_params=pltpu.CompilerParams(
            dimension_semantics=("parallel",),
            vmem_limit_bytes=32 * 1024 * 1024,
        ),
    )(inv_temp_arr, weight1, gumbel_noise_t, x_flat)

    # (out_dim, bd_grid) -> drop lane padding -> (B, out_dim, D)
    out_flat = out_flat[:, :bd]
    return jnp.transpose(out_flat.reshape(out_dim, B, D), (1, 0, 2))


def encoder_forward_ref(xyz, weight1, gumbel_noise_t, temp):
    """Pure-JAX reference mirroring the PyTorch module (hard=False)."""
    y = (weight1.T + gumbel_noise_t.T) / temp          # (in_dim, out_dim)
    y = jax.nn.softmax(y, axis=-1)
    cg = y.T                                           # (out_dim, in_dim)
    cg = cg / jnp.sum(cg, axis=1, keepdims=True)
    return jnp.einsum("oi,bid->bod", cg, xyz)


if __name__ == "__main__":
    # Small shapes consistent with the module: coarse-grain 16 atoms -> 8 beads.
    in_dim, out_dim, D = 16, 8, 3
    temp = 1.0
    eps = 1e-20

    key = jax.random.PRNGKey(0)
    k_w, k_xyz, k_u = jax.random.split(key, 3)

    # weight1 = torch.rand(out_dim, in_dim)  -> deterministic uniform init
    weight1 = jax.random.uniform(k_w, (out_dim, in_dim), dtype=jnp.float32)

    # sample_gumbel(weight1.t().size()) -> shape (in_dim, out_dim), then used
    # additively on weight1.t(); pass it transposed so the kernel stays in
    # (out_dim, in_dim) layout.
    u = jax.random.uniform(k_u, (in_dim, out_dim), dtype=jnp.float32)
    gumbel = -jnp.log(-jnp.log(u + eps) + eps)
    gumbel_t = gumbel.T                                # (out_dim, in_dim)

    # Case 1: demo batch (single grid block, heavy lane padding).
    B = 2
    xyz = jax.random.normal(k_xyz, (B, in_dim, D), dtype=jnp.float32)
    out = jax.block_until_ready(encoder_forward(xyz, weight1, gumbel_t, temp))
    ref = encoder_forward_ref(xyz, weight1, gumbel_t, temp)
    assert out.shape == (B, out_dim, D)
    assert jnp.allclose(out, ref, atol=1e-5, rtol=1e-5), (
        f"max abs err {jnp.max(jnp.abs(out - ref))}"
    )

    # Case 2: larger batch with a forced small tile to exercise a multi-block,
    # pipelined, megacore-shardable grid (bd=192 -> tn=128 -> grid=(2,)).
    B2 = 64
    xyz2 = jax.random.normal(jax.random.PRNGKey(1), (B2, in_dim, D), jnp.float32)
    out2 = jax.block_until_ready(
        encoder_forward(xyz2, weight1, gumbel_t, temp, max_tile_n=128)
    )
    ref2 = encoder_forward_ref(xyz2, weight1, gumbel_t, temp)
    assert out2.shape == (B2, out_dim, D)
    assert jnp.allclose(out2, ref2, atol=1e-5, rtol=1e-5), (
        f"max abs err {jnp.max(jnp.abs(out2 - ref2))}"
    )

    print("KERNEL_OK")
</pallas_src>

<mosaic_0001>
module attributes {stable_mosaic.version = 11 : i64} {
  func.func @encoder_kernel(%arg0: i32, %arg1: memref<1x1xf32, #tpu.memory_space<smem>>, %arg2: memref<8x16xf32, #tpu.memory_space<vmem>>, %arg3: memref<8x16xf32, #tpu.memory_space<vmem>>, %arg4: memref<16x128xf32, #tpu.memory_space<vmem>>, %arg5: memref<8x128xf32, #tpu.memory_space<vmem>>) attributes {dimension_semantics = [#tpu.dimension_semantics<parallel>], iteration_bounds = array<i64: 1>, scalar_prefetch = 0 : i64, scratch_operands = 0 : i64, tpu.core_type = #tpu.core_type<tc>, window_params = [{transform_indices = @transform_0, window_bounds = array<i64: 1, 1>}, {pipeline_mode = #tpu.pipeline_mode<synchronous>, transform_indices = @transform_1, window_bounds = array<i64: 8, 16>}, {pipeline_mode = #tpu.pipeline_mode<synchronous>, transform_indices = @transform_2, window_bounds = array<i64: 8, 16>}, {transform_indices = @transform_3, window_bounds = array<i64: 16, 128>}, {transform_indices = @transform_4, window_bounds = array<i64: 8, 128>}]} {
    %c0 = arith.constant 0 : index
    %c0_0 = arith.constant 0 : index
    %0 = memref.load %arg1[%c0, %c0_0] : memref<1x1xf32, #tpu.memory_space<smem>>
    %c0_1 = arith.constant 0 : index
    %c0_2 = arith.constant 0 : index
    %1 = vector.load %arg2[%c0_1, %c0_2] : memref<8x16xf32, #tpu.memory_space<vmem>>, vector<8x16xf32>
    %c0_3 = arith.constant 0 : index
    %c0_4 = arith.constant 0 : index
    %2 = vector.load %arg3[%c0_3, %c0_4] : memref<8x16xf32, #tpu.memory_space<vmem>>, vector<8x16xf32>
    %3 = arith.addf %1, %2 : vector<8x16xf32>
    %4 = vector.broadcast %0 : f32 to vector<8x16xf32>
    %5 = arith.mulf %3, %4 : vector<8x16xf32>
    %cst = arith.constant dense<0xFF800000> : vector<16xf32>
    %6 = vector.multi_reduction <maximumf>, %5, %cst [0] : vector<8x16xf32> to vector<16xf32>
    %7 = vector.shape_cast %6 : vector<16xf32> to vector<1x16xf32>
    %8 = vector.broadcast %7 : vector<1x16xf32> to vector<8x16xf32>
    %9 = arith.subf %5, %8 : vector<8x16xf32>
    %10 = math.exp %9 : vector<8x16xf32>
    %cst_5 = arith.constant dense<0.000000e+00> : vector<16xf32>
    %11 = vector.multi_reduction <add>, %10, %cst_5 [0] : vector<8x16xf32> to vector<16xf32>
    %12 = vector.shape_cast %11 : vector<16xf32> to vector<1x16xf32>
    %13 = tpu.reciprocal %12 : vector<1x16xf32> -> vector<1x16xf32>
    %14 = vector.broadcast %13 : vector<1x16xf32> to vector<8x16xf32>
    %15 = arith.mulf %10, %14 : vector<8x16xf32>
    %cst_6 = arith.constant dense<0.000000e+00> : vector<8xf32>
    %16 = vector.multi_reduction <add>, %15, %cst_6 [1] : vector<8x16xf32> to vector<8xf32>
    %17 = vector.shape_cast %16 : vector<8xf32> to vector<8x1xf32>
    %18 = tpu.reciprocal %17 : vector<8x1xf32> -> vector<8x1xf32>
    %19 = vector.broadcast %18 : vector<8x1xf32> to vector<8x16xf32>
    %20 = arith.mulf %15, %19 : vector<8x16xf32>
    %c0_7 = arith.constant 0 : index
    %c0_8 = arith.constant 0 : index
    %21 = vector.load %arg4[%c0_7, %c0_8] : memref<16x128xf32, #tpu.memory_space<vmem>>, vector<16x128xf32>
    %cst_9 = arith.constant dense<0.000000e+00> : vector<8x128xf32>
    %22 = tpu.matmul %20, %21, %cst_9 {dimension_numbers = #tpu.dot_dimension_numbers<[1], [0], [0], [1], [0, 0, 1, 1], [], []>} : vector<8x16xf32>, vector<16x128xf32>, vector<8x128xf32> -> vector<8x128xf32>
    %c0_10 = arith.constant 0 : index
    %c0_11 = arith.constant 0 : index
    %23 = vector.load %arg5[%c0_10, %c0_11] : memref<8x128xf32, #tpu.memory_space<vmem>>, vector<8x128xf32>
    tpu.vector_store %arg5[%c0_10, %c0_11], %22 {strides = array<i32>} : memref<8x128xf32, #tpu.memory_space<vmem>>, vector<8x128xf32>,
    return
  }
  func.func @transform_0(%arg0: i32) -> (i32, i32) {
    %c0_i32 = arith.constant 0 : i32
    %c0_i32_0 = arith.constant 0 : i32
    %c0_i32_1 = arith.constant 0 : i32
    return %c0_i32, %c0_i32_0 : i32, i32
  }
  func.func @transform_1(%arg0: i32) -> (i32, i32) {
    %c0_i32 = arith.constant 0 : i32
    %c0_i32_0 = arith.constant 0 : i32
    %c0_i32_1 = arith.constant 0 : i32
    return %c0_i32, %c0_i32_0 : i32, i32
  }
  func.func @transform_2(%arg0: i32) -> (i32, i32) {
    %c0_i32 = arith.constant 0 : i32
    %c0_i32_0 = arith.constant 0 : i32
    %c0_i32_1 = arith.constant 0 : i32
    return %c0_i32, %c0_i32_0 : i32, i32
  }
  func.func @transform_3(%arg0: i32) -> (i32, i32) {
    %c0_i32 = arith.constant 0 : i32
    %c0_i32_0 = arith.constant 0 : i32
    return %c0_i32, %arg0 : i32, i32
  }
  func.func @transform_4(%arg0: i32) -> (i32, i32) {
    %c0_i32 = arith.constant 0 : i32
    %c0_i32_0 = arith.constant 0 : i32
    return %c0_i32, %arg0 : i32, i32
  }
}

</mosaic_0001>

<llo_original>
// kernel: tpu_custom_call.1
$region0: #{tpu_custom_call.1}
  #allocation0 [shape = 'u32[]', space=smem, size = 0x4, offset = 0x4, fixed_abs, tag = 'smem constant byte address 0x4 - core index']
  #allocation1 [shape = 'u32[144,128]{1,0:T(1,128)}', space=vmem, size = 0x12000, scoped, tag = 'internal scratch']
  #allocation2 [shape = 'f32[1,1]{1,0:T(1,128)S(6)}', space=smem, size = 0x200, scoped, tag = 'scoped memory for tpu_custom_call.1']
  %s0 = inlined_call_operand.<no memory space> [shape: f32[1,1], index: 0, kind: input, shape index: {}]
  %s1 = inlined_call_operand.hbm [shape: f32[8,16], index: 1, kind: input, shape index: {}]
  %s2 = inlined_call_operand.hbm [shape: f32[8,16], index: 2, kind: input, shape index: {}]
  %s3 = inlined_call_operand.hbm [shape: f32[16,128], index: 3, kind: input, shape index: {}]
  %s4 = inlined_call_operand.hbm [shape: f32[8,128], index: 4, kind: output, shape index: {}]
  %s5 = sld [smem:[#allocation0]]
  $region38: #{tpu_custom_call.1} parent=0
    _
  %s7 = ssub.s32 1, %s5
  %s8 = scalar_select 0, %s7, %s5
  %9 = sst [smem:[#allocation2]] %s0
  $region1: #{tpu_custom_call.1} parent=0
    #allocation3 [shape = 'u8[4096]{0}', space=vmem, size = 0x1000, scoped, tag = 'input window, operand 1, single buffered']
    #allocation4 [shape = 's32[1]{0}', space=sflag, size = 0x4, scoped, tag = 'scoped memory for tpu_custom_call.1']
    #allocation5 [shape = 's32[1]{0}', space=sflag, size = 0x4, scoped, tag = 'scoped memory for tpu_custom_call.1']
    #allocation6 [shape = 'u8[4096]{0}', space=vmem, size = 0x1000, scoped, tag = 'input window, operand 2, single buffered']
    #allocation7 [shape = 's32[1]{0}', space=sflag, size = 0x4, scoped, tag = 'scoped memory for tpu_custom_call.1']
    #allocation8 [shape = 'u8[8192]{0}', space=vmem, size = 0x2000, scoped, tag = 'input window, operand 3, single buffered']
    #allocation9 [shape = 'u8[4096]{0}', space=vmem, size = 0x1000, scoped, tag = 'output window, operand 0, single buffered']
    %10 = vsyncpa [#allocation4], 0
    %11 = vsyncpa [#allocation7], 0
    %12 = vsyncpa [#allocation5], 0
    // Predicated region
    $region2: #{tpu_custom_call.1} parent=1 // pred_check
      _
    $region3: #{tpu_custom_call.1} parent=1 // pred_check_branch
      %14 = sbr.rel (0) target = $region5
    $region4: #{tpu_custom_call.1} parent=1 // pred_region
      _
    $region5: #{tpu_custom_call.1} parent=1 // pred_fallthru
      _
    // Predicated region
    $region6: #{tpu_custom_call.1} parent=1 // pred_check
      _
    $region7: #{tpu_custom_call.1} parent=1 // pred_check_branch
      %16 = sbr.rel (0) target = $region9
    $region8: #{tpu_custom_call.1} parent=1 // pred_region
      %s18 = ssub.s32 128, 128
      %19 = vsyncadd [#allocation4], %s18
      %s21 = sshll.u32 [#allocation3], 4
      %s22 = int_to_ptr.vmem [resolvable:$true] %s21
      %24 = dma.hbm_to_vmem [thread:$0]  %s1, 128, %s22, [#allocation4]
    $region9: #{tpu_custom_call.1} parent=1 // pred_fallthru
      _
    // Predicated region
    $region10: #{tpu_custom_call.1} parent=1 // pred_check
      _
    $region11: #{tpu_custom_call.1} parent=1 // pred_check_branch
      %26 = sbr.rel (0) target = $region13
    $region12: #{tpu_custom_call.1} parent=1 // pred_region
      %s28 = ssub.s32 128, 128
      %29 = vsyncadd [#allocation7], %s28
      %s31 = sshll.u32 [#allocation6], 4
      %s32 = int_to_ptr.vmem [resolvable:$true] %s31
      %34 = dma.hbm_to_vmem [thread:$0]  %s2, 128, %s32, [#allocation7]
    $region13: #{tpu_custom_call.1} parent=1 // pred_fallthru
      _
    // Predicated region
    $region14: #{tpu_custom_call.1} parent=1 // pred_check
      _
    $region15: #{tpu_custom_call.1} parent=1 // pred_check_branch
      %36 = sbr.rel (0) target = $region17
    $region16: #{tpu_custom_call.1} parent=1 // pred_region
      %s38 = ssub.s32 256, 256
      %39 = vsyncadd [#allocation7], %s38
      %s40 = sshll.u32 [#allocation8], 4
      %s41 = int_to_ptr.vmem [resolvable:$true] %s40
      %46 = dma.hbm_to_vmem [thread:$0]  %s3, 256, %s41, [#allocation7], 128, 128, 8
    $region17: #{tpu_custom_call.1} parent=1 // pred_fallthru
      _
    // Predicated region
    $region18: #{tpu_custom_call.1} parent=1 // pred_check
      _
    $region19: #{tpu_custom_call.1} parent=1 // pred_check_branch
      %48 = sbr.rel (0) target = $region21
    $region20: #{tpu_custom_call.1} parent=1 // pred_region
      %49 = dma.done [#allocation4], 128
    $region21: #{tpu_custom_call.1} parent=1 // pred_fallthru
      _
    // Predicated region
    $region22: #{tpu_custom_call.1} parent=1 // pred_check
      _
    $region23: #{tpu_custom_call.1} parent=1 // pred_check_branch
      %51 = sbr.rel (0) target = $region25
    $region24: #{tpu_custom_call.1} parent=1 // pred_region
      %52 = dma.done [#allocation7], 128
    $region25: #{tpu_custom_call.1} parent=1 // pred_fallthru
      _
    // Predicated region
    $region26: #{tpu_custom_call.1} parent=1 // pred_check
      _
    $region27: #{tpu_custom_call.1} parent=1 // pred_check_branch
      %54 = sbr.rel (0) target = $region29
    $region28: #{tpu_custom_call.1} parent=1 // pred_region
      %55 = dma.done [#allocation7], 256
    $region29: #{tpu_custom_call.1} parent=1 // pred_fallthru
      _
    %s56 = sld [smem:[#allocation2]]
    %v57 = vld [vmem:[#allocation3] sm:$0xff]
    %v58 = vld [vmem:[#allocation6] sm:$0xff]
    %v59 = vadd.f32 %v57, %v58
    %v60 = vstv %s56
    %v61 = vmul.f32 %v59, %v60
    %vm62 = vcmask 130048
    %v63 = vsel %vm62, %v61, -inf
    %v64 = vrot.slane %v63, 4
    %v65 = vmax.f32 %v63, %v64
    %v66 = vrot.slane %v65, 2
    %v67 = vmax.f32 %v65, %v66
    %v68 = vrot.slane %v67, 1
    %v69 = vmax.f32 %v67, %v68
    %v70 = vsub.f32 %v61, %v69
    %v71 = vmul.f32 %v70, 1.442695
    %v72 = vpow.pop %v71
    %v73 = vsel %vm62, %v72, 0.0
    %v74 = vrot.slane %v73, 4
    %v75 = vadd.f32 %v73, %v74
    %v76 = vrot.slane %v75, 2
    %v77 = vadd.f32 %v75, %v76
    %v78 = vrot.slane %v77, 1
    %v79 = vadd.f32 %v77, %v78
    %v80 = vrcp.pop %v79
    %v81 = vmul.f32 %v72, %v80
    %v82 = vsel %vm62, %v81, 0.0
    %83 = vadd.xlane.f32.xlu0 %v82
    %v84 = vpop.xlane.xlu0 %83
    %v85 = vrcp.pop %v84
    %v86 = vmul.f32 %v81, %v85
    %v87 = vld [vmem:[#allocation8] sm:$0xff]
    %v88 = vld [vmem:[#allocation8 + $0x8] sm:$0xff]
    %v90 = vsel %vm62, %v86, 0
    %92 = vmatprep.subr.mxu0 0.0
    %93 = vmatpush1.msra.mxu0 %v87
    %94 = vmatprep.subr.mxu0 0.0
    %95 = vmatpush1.msra.mxu0 %v88
    %96 = vmatprep.subr.mxu0 0.0
    %97 = vmatpush1.msra.mxu0 0.0
    %98 = vmatprep.subr.mxu0 0.0
    %99 = vmatpush1.msra.mxu0 0.0
    %100 = vmatprep.subr.mxu0 0.0
    %101 = vmatpush1.msra.mxu0 0.0
    %102 = vmatprep.subr.mxu0 0.0
    %103 = vmatpush1.msra.mxu0 0.0
    %104 = vmatprep.subr.mxu0 0.0
    %105 = vmatpush1.msra.mxu0 0.0
    %106 = vmatprep.subr.mxu0 0.0
    %107 = vmatpush1.msra.mxu0 0.0
    %108 = vmatprep.subr.mxu0 0.0
    %109 = vmatpush1.msra.mxu0 0.0
    %110 = vmatprep.subr.mxu0 0.0
    %111 = vmatpush1.msra.mxu0 0.0
    %112 = vmatprep.subr.mxu0 0.0
    %113 = vmatpush1.msra.mxu0 0.0
    %114 = vmatprep.subr.mxu0 0.0
    %115 = vmatpush1.msra.mxu0 0.0
    %116 = vmatprep.subr.mxu0 0.0
    %117 = vmatpush1.msra.mxu0 0.0
    %118 = vmatprep.subr.mxu0 0.0
    %119 = vmatpush1.msra.mxu0 0.0
    %120 = vmatprep.subr.mxu0 0.0
    %121 = vmatpush1.msra.mxu0 0.0
    %122 = vmatprep.subr.mxu0 0.0
    %123 = vmatpush1.msra.mxu0 0.0
    %124 = vmatprep.subr.mxu0 0.0
    %125 = vmatpush1.msra.mxu0 0.0
    %126 = vmatprep.subr.mxu0 0.0
    %127 = vmatpush1.msra.mxu0 0.0
    %128 = vmatprep.subr.mxu0 0.0
    %129 = vmatpush1.msra.mxu0 0.0
    %130 = vmatprep.subr.mxu0 0.0
    %131 = vmatpush1.msra.mxu0 0.0
    %132 = vmatprep.subr.mxu0 0.0
    %133 = vmatpush1.msra.mxu0 0.0
    %134 = vmatprep.subr.mxu0 0.0
    %135 = vmatpush1.msra.mxu0 0.0
    %136 = vmatprep.subr.mxu0 0.0
    %137 = vmatpush1.msra.mxu0 0.0
    %138 = vmatprep.subr.mxu0 0.0
    %139 = vmatpush1.msra.mxu0 0.0
    %140 = vmatprep.subr.mxu0 0.0
    %141 = vmatpush1.msra.mxu0 0.0
    %142 = vmatprep.subr.mxu0 0.0
    %143 = vmatpush1.msra.mxu0 0.0
    %144 = vmatprep.subr.mxu0 0.0
    %145 = vmatpush1.msra.mxu0 0.0
    %146 = vmatprep.subr.mxu0 0.0
    %147 = vmatpush1.msra.mxu0 0.0
    %148 = vmatprep.subr.mxu0 0.0
    %149 = vmatpush1.msra.mxu0 0.0
    %150 = vmatprep.subr.mxu0 0.0
    %151 = vmatpush1.msra.mxu0 0.0
    %152 = vmatprep.subr.mxu0 0.0
    %153 = vmatpush1.msra.mxu0 0.0
    %154 = vmatprep.subr.mxu0 0.0
    %155 = vmatpush1.msra.mxu0 0.0
    %156 = vmatprep.mubr.f32.mxu0 0.0
    %157 = vmatmul.mubr.f32.gmra.mrb[0].mxu0 %v90
    %v158 = vpop.f32.mrb[0].mxu0
    %v159 = vadd.f32 0.0, %v158
    %v160 = vpop.f32.mrb[0].mxu0
    %161 = vdwg.mxu0
    %162 = vst [vmem:[#allocation9] sm:$0xff] %v159
    // Predicated region
    $region30: #{tpu_custom_call.1} parent=1 // pred_check
      _
    $region31: #{tpu_custom_call.1} parent=1 // pred_check_branch
      %164 = sbr.rel (0) target = $region33
    $region32: #{tpu_custom_call.1} parent=1 // pred_region
      %s166 = ssub.s32 128, 128
      %167 = vsyncadd [#allocation5], %s166
      %s169 = sshll.u32 [#allocation9], 4
      %s170 = int_to_ptr.vmem [resolvable:$true] %s169
      %172 = dma.vmem_to_hbm [thread:$0]  %s170, 128, %s4, [#allocation5]
    $region33: #{tpu_custom_call.1} parent=1 // pred_fallthru
      _
    // Predicated region
    $region34: #{tpu_custom_call.1} parent=1 // pred_check
      _
    $region35: #{tpu_custom_call.1} parent=1 // pred_check_branch
      %174 = sbr.rel (0) target = $region37
    $region36: #{tpu_custom_call.1} parent=1 // pred_region
      %175 = dma.done [#allocation5], 128
    $region37: #{tpu_custom_call.1} parent=1 // pred_fallthru
      _
    %176 = vsyncpa [#allocation4], 1
    %177 = vsyncpa [#allocation7], 1
    %178 = vsyncpa [#allocation5], 1

</llo_original>
